<compile_context>
chip_gen: v5e
topology: v5e:2x2
jax: 0.10.0
libtpu: 0.0.40
codegen_flags: <defaults>
</compile_context>

<pallas_src>
import functools

import jax
import jax.numpy as jnp
import numpy as np
from jax.experimental import pallas as pl
from jax.experimental.pallas import tpu as pltpu


MAX_TILE_B = 4096  # x tile at 4096x64 bf16 ~= 512 KiB -> far below any VMEM limit


def _round_up(n, m):
    return ((n + m - 1) // m) * m


def _device_kind():
    try:
        return jax.devices()[0].device_kind.lower()
    except Exception:
        return ""


def _default_tanh_bf16():
    # v6e / v7x have bf16 EUP+VPU; v5e (and older) do not -> keep f32 tanh there.
    kind = _device_kind()
    return ("v6" in kind) or ("v7" in kind) or ("7x" in kind)


def _num_parallel_cores():
    # Chips where a "parallel" grid axis is sharded across 2 TensorCores.
    kind = _device_kind()
    if ("v7" in kind) or ("7x" in kind) or ("v4" in kind):
        return 2
    return 1


def _choose_tile_b(batch, parallel_cores=1, max_tile=MAX_TILE_B):
    """Remainder-aware batch tile.

    Big tiles amortize the ~0.35us/grid-step overhead; on 2-TC chips we keep
    an even, >=2 step count so both TensorCores get balanced work.
    """
    aligned = _round_up(max(int(batch), 1), 8)
    if parallel_cores >= 2 and aligned >= 16:
        steps = 2 * pl.cdiv(aligned, 2 * max_tile)      # even number of steps
        tile = _round_up(pl.cdiv(aligned, steps), 8)
        return max(8, min(tile, max_tile))
    return max(8, min(aligned, max_tile))


def _make_a2c_kernel(n_hidden, tanh_in_bf16):
    """Kernel for `n_hidden` (Linear, Tanh) layers + fused actor/critic head."""

    def kernel(*refs):
        # refs layout: [x, (w_i, b_i) * n_hidden, w_head, b_head, out]
        h = refs[0][...]                                  # (TILE_B, in), ideally bf16
        if h.dtype != jnp.bfloat16:                       # static (trace-time) branch
            h = h.astype(jnp.bfloat16)
        idx = 1
        for _ in range(n_hidden):
            w = refs[idx][...]                            # (in, out)  bf16
            b = refs[idx + 1][...]                        # (1, out)   f32
            idx += 2
            z = jnp.dot(h, w, preferred_element_type=jnp.float32) + b  # f32 accum
            if tanh_in_bf16:
                h = jnp.tanh(z.astype(jnp.bfloat16))      # bf16 EUP (v6e / v7x)
            else:
                h = jnp.tanh(z).astype(jnp.bfloat16)      # f32 tanh (v5e-safe)
        w_h = refs[idx][...]                              # (last, A+1) bf16
        b_h = refs[idx + 1][...]                          # (1, A+1)    f32
        out_ref = refs[idx + 2]                           # (TILE_B, A+1) f32
        out_ref[...] = jnp.dot(h, w_h, preferred_element_type=jnp.float32) + b_h

    return kernel


def prepare_params(params):
    """One-time parameter prep, hoisted out of the per-call hot path.

    Casts hidden weights to bf16 / biases to f32 and fuses the actor+critic
    heads into one (last_dim, num_actions + 1) matmul.
    """
    hidden = params.get("hidden") or []
    w_a, b_a = params["actor"]
    w_c, b_c = params["critic"]
    flat = []
    for w, b in hidden:
        flat += [jnp.asarray(w, jnp.bfloat16), jnp.asarray(b, jnp.float32)]
    w_head = jnp.concatenate([jnp.asarray(w_a), jnp.asarray(w_c)], axis=1)
    b_head = jnp.concatenate([jnp.asarray(b_a), jnp.asarray(b_c)], axis=1)
    flat += [w_head.astype(jnp.bfloat16), b_head.astype(jnp.float32)]
    return tuple(flat)


@functools.partial(jax.jit, static_argnames=("num_actions", "tile_b", "tanh_in_bf16"))
def _forward(x, flat_params, *, num_actions, tile_b, tanh_in_bf16):
    batch, num_inputs = x.shape
    head_dim = flat_params[-1].shape[1]
    n_hidden = (len(flat_params) - 2) // 2

    padded = pl.cdiv(batch, tile_b) * tile_b
    x_p = x if padded == batch else jnp.pad(x, ((0, padded - batch), (0, 0)))

    grid = (padded // tile_b,)
    in_specs = [pl.BlockSpec((tile_b, num_inputs), lambda i: (i, 0))]
    for a in flat_params:
        # Full-array block, same block every step -> weights stay VMEM-resident.
        # TODO(synk): stream weights over an extra grid axis if hidden layers
        # ever grow to multi-thousand width (v7x VMEM is 64 MiB).
        in_specs.append(pl.BlockSpec(a.shape, lambda i: (0, 0)))
    out_specs = pl.BlockSpec((tile_b, head_dim), lambda i: (i, 0))
    out_shape = jax.ShapeDtypeStruct((padded, head_dim), jnp.float32)

    fused = pl.pallas_call(
        _make_a2c_kernel(n_hidden, tanh_in_bf16),
        grid=grid,
        in_specs=in_specs,
        out_specs=out_specs,
        out_shape=out_shape,
        compiler_params=pltpu.CompilerParams(
            dimension_semantics=("parallel",),   # shards batch across TCs on v7x/v4
        ),
    )(x_p, *flat_params)

    fused = fused[:batch]
    return fused[:, :num_actions], fused[:, num_actions:num_actions + 1]


def net_a2c_forward(x, prepared_params, *, num_actions, tile_b=None, tanh_in_bf16=None):
    """x: (batch, num_inputs) activations (bf16 preferred).
    prepared_params: output of prepare_params().
    Returns (actor_logits (B, num_actions), critic_value (B, 1))."""
    if tile_b is None:
        tile_b = _choose_tile_b(x.shape[0], _num_parallel_cores())
    if tanh_in_bf16 is None:
        tanh_in_bf16 = _default_tanh_bf16()
    return _forward(x, prepared_params, num_actions=num_actions,
                    tile_b=int(tile_b), tanh_in_bf16=bool(tanh_in_bf16))


def init_params(key, num_inputs, num_actions, hidden_layers):
    """Deterministic init matching PyTorch nn.Linear default (U(-1/sqrt(fan_in), ..))."""

    def linear(key, fan_in, fan_out):
        kw, kb = jax.random.split(key)
        bound = 1.0 / np.sqrt(fan_in)
        # Stored as (in, out) (transposed vs torch's (out, in)).
        w = jax.random.uniform(kw, (fan_in, fan_out), jnp.float32, -bound, bound)
        b = jax.random.uniform(kb, (1, fan_out), jnp.float32, -bound, bound)
        return w, b

    params = {"hidden": []}
    last = num_inputs
    hidden_layers = tuple(hidden_layers) if hidden_layers is not None else ()
    keys = jax.random.split(key, len(hidden_layers) + 2)
    for i, h in enumerate(hidden_layers):
        params["hidden"].append(linear(keys[i], last, h))
        last = h
    params["actor"] = linear(keys[-2], last, num_actions)
    params["critic"] = linear(keys[-1], last, 1)
    return params


def reference_forward_matched(x, params, tanh_in_bf16):
    """Mirrors the kernel arithmetic (bf16 MXU operands, f32 accumulate/bias)."""

    def mm(h, w):
        return jnp.dot(h, jnp.asarray(w, jnp.bfloat16),
                       preferred_element_type=jnp.float32)

    h = jnp.asarray(x, jnp.bfloat16)
    for w, b in params["hidden"]:
        z = mm(h, w) + jnp.asarray(b, jnp.float32)
        if tanh_in_bf16:
            h = jnp.tanh(z.astype(jnp.bfloat16))
        else:
            h = jnp.tanh(z).astype(jnp.bfloat16)
    w_a, b_a = params["actor"]
    w_c, b_c = params["critic"]
    return mm(h, w_a) + b_a, mm(h, w_c) + b_c


def reference_forward_f32(x, params):
    h = jnp.asarray(x, jnp.float32)
    for w, b in params["hidden"]:
        h = jnp.tanh(h @ w + b)
    w_a, b_a = params["actor"]
    w_c, b_c = params["critic"]
    return h @ w_a + b_a, h @ w_c + b_c


if __name__ == "__main__":
    # Connect-four-ish sizes kept small: num_inputs = board features, 7 actions.
    batch = 8
    num_inputs = 64
    num_actions = 7
    hidden_layers = (128, 64)

    key = jax.random.PRNGKey(0)
    k_params, k_x = jax.random.split(key)

    params = init_params(k_params, num_inputs, num_actions, hidden_layers)
    prepared = prepare_params(params)           # one-time: head fusion + casts

    # Activations produced directly in bf16 (halves the dominant HBM stream).
    x = jax.random.normal(k_x, (batch, num_inputs), jnp.bfloat16)

    tanh_in_bf16 = _default_tanh_bf16()
    actor_out, critic_out = jax.block_until_ready(
        net_a2c_forward(x, prepared, num_actions=num_actions,
                        tanh_in_bf16=tanh_in_bf16))

    # Check against a reference that mirrors the kernel arithmetic exactly.
    actor_ref, critic_ref = reference_forward_matched(x, params, tanh_in_bf16)
    np.testing.assert_allclose(np.asarray(actor_out), np.asarray(actor_ref),
                               rtol=5e-3, atol=5e-3)
    np.testing.assert_allclose(np.asarray(critic_out), np.asarray(critic_ref),
                               rtol=5e-3, atol=5e-3)

    # Loose sanity check vs the full-f32 PyTorch-equivalent forward.
    actor_f32, critic_f32 = reference_forward_f32(x, params)
    np.testing.assert_allclose(np.asarray(actor_out), np.asarray(actor_f32),
                               rtol=5e-2, atol=8e-2)
    np.testing.assert_allclose(np.asarray(critic_out), np.asarray(critic_f32),
                               rtol=5e-2, atol=8e-2)

    print("KERNEL_OK")
</pallas_src>

<mosaic_0001>
module attributes {stable_mosaic.version = 11 : i64} {
  func.func @kernel(%arg0: i32, %arg1: memref<8x64xbf16, #tpu.memory_space<vmem>>, %arg2: memref<64x128xbf16, #tpu.memory_space<vmem>>, %arg3: memref<1x128xf32, #tpu.memory_space<vmem>>, %arg4: memref<128x64xbf16, #tpu.memory_space<vmem>>, %arg5: memref<1x64xf32, #tpu.memory_space<vmem>>, %arg6: memref<64x8xbf16, #tpu.memory_space<vmem>>, %arg7: memref<1x8xf32, #tpu.memory_space<vmem>>, %arg8: memref<8x8xf32, #tpu.memory_space<vmem>>) attributes {dimension_semantics = [#tpu.dimension_semantics<parallel>], iteration_bounds = array<i64: 1>, scalar_prefetch = 0 : i64, scratch_operands = 0 : i64, tpu.core_type = #tpu.core_type<tc>, window_params = [{transform_indices = @transform_0, window_bounds = array<i64: 8, 64>}, {pipeline_mode = #tpu.pipeline_mode<synchronous>, transform_indices = @transform_1, window_bounds = array<i64: 64, 128>}, {pipeline_mode = #tpu.pipeline_mode<synchronous>, transform_indices = @transform_2, window_bounds = array<i64: 1, 128>}, {pipeline_mode = #tpu.pipeline_mode<synchronous>, transform_indices = @transform_3, window_bounds = array<i64: 128, 64>}, {pipeline_mode = #tpu.pipeline_mode<synchronous>, transform_indices = @transform_4, window_bounds = array<i64: 1, 64>}, {pipeline_mode = #tpu.pipeline_mode<synchronous>, transform_indices = @transform_5, window_bounds = array<i64: 64, 8>}, {pipeline_mode = #tpu.pipeline_mode<synchronous>, transform_indices = @transform_6, window_bounds = array<i64: 1, 8>}, {transform_indices = @transform_7, window_bounds = array<i64: 8, 8>}]} {
    %c0 = arith.constant 0 : index
    %c0_0 = arith.constant 0 : index
    %0 = vector.load %arg1[%c0, %c0_0] : memref<8x64xbf16, #tpu.memory_space<vmem>>, vector<8x64xbf16>
    %c0_1 = arith.constant 0 : index
    %c0_2 = arith.constant 0 : index
    %1 = vector.load %arg2[%c0_1, %c0_2] : memref<64x128xbf16, #tpu.memory_space<vmem>>, vector<64x128xbf16>
    %c0_3 = arith.constant 0 : index
    %c0_4 = arith.constant 0 : index
    %2 = vector.load %arg3[%c0_3, %c0_4] : memref<1x128xf32, #tpu.memory_space<vmem>>, vector<1x128xf32>
    %cst = arith.constant dense<0.000000e+00> : vector<8x128xf32>
    %3 = tpu.matmul %0, %1, %cst {dimension_numbers = #tpu.dot_dimension_numbers<[1], [0], [0], [1], [0, 0, 1, 1], [], []>} : vector<8x64xbf16>, vector<64x128xbf16>, vector<8x128xf32> -> vector<8x128xf32>
    %4 = vector.broadcast %2 : vector<1x128xf32> to vector<8x128xf32>
    %5 = arith.addf %3, %4 : vector<8x128xf32>
    %6 = math.tanh %5 : vector<8x128xf32>
    %7 = arith.truncf %6 : vector<8x128xf32> to vector<8x128xbf16>
    %c0_5 = arith.constant 0 : index
    %c0_6 = arith.constant 0 : index
    %8 = vector.load %arg4[%c0_5, %c0_6] : memref<128x64xbf16, #tpu.memory_space<vmem>>, vector<128x64xbf16>
    %c0_7 = arith.constant 0 : index
    %c0_8 = arith.constant 0 : index
    %9 = vector.load %arg5[%c0_7, %c0_8] : memref<1x64xf32, #tpu.memory_space<vmem>>, vector<1x64xf32>
    %cst_9 = arith.constant dense<0.000000e+00> : vector<8x64xf32>
    %10 = tpu.matmul %7, %8, %cst_9 {dimension_numbers = #tpu.dot_dimension_numbers<[1], [0], [0], [1], [0, 0, 1, 1], [], []>} : vector<8x128xbf16>, vector<128x64xbf16>, vector<8x64xf32> -> vector<8x64xf32>
    %11 = vector.broadcast %9 : vector<1x64xf32> to vector<8x64xf32>
    %12 = arith.addf %10, %11 : vector<8x64xf32>
    %13 = math.tanh %12 : vector<8x64xf32>
    %14 = arith.truncf %13 : vector<8x64xf32> to vector<8x64xbf16>
    %c0_10 = arith.constant 0 : index
    %c0_11 = arith.constant 0 : index
    %15 = vector.load %arg6[%c0_10, %c0_11] : memref<64x8xbf16, #tpu.memory_space<vmem>>, vector<64x8xbf16>
    %c0_12 = arith.constant 0 : index
    %c0_13 = arith.constant 0 : index
    %16 = vector.load %arg7[%c0_12, %c0_13] : memref<1x8xf32, #tpu.memory_space<vmem>>, vector<1x8xf32>
    %cst_14 = arith.constant dense<0.000000e+00> : vector<8x8xf32>
    %17 = tpu.matmul %14, %15, %cst_14 {dimension_numbers = #tpu.dot_dimension_numbers<[1], [0], [0], [1], [0, 0, 1, 1], [], []>} : vector<8x64xbf16>, vector<64x8xbf16>, vector<8x8xf32> -> vector<8x8xf32>
    %18 = vector.broadcast %16 : vector<1x8xf32> to vector<8x8xf32>
    %19 = arith.addf %17, %18 : vector<8x8xf32>
    %c0_15 = arith.constant 0 : index
    %c0_16 = arith.constant 0 : index
    %20 = vector.load %arg8[%c0_15, %c0_16] : memref<8x8xf32, #tpu.memory_space<vmem>>, vector<8x8xf32>
    tpu.vector_store %arg8[%c0_15, %c0_16], %19 {strides = array<i32>} : memref<8x8xf32, #tpu.memory_space<vmem>>, vector<8x8xf32>,
    return
  }
  func.func @transform_0(%arg0: i32) -> (i32, i32) {
    %c0_i32 = arith.constant 0 : i32
    %c0_i32_0 = arith.constant 0 : i32
    return %arg0, %c0_i32 : i32, i32
  }
  func.func @transform_1(%arg0: i32) -> (i32, i32) {
    %c0_i32 = arith.constant 0 : i32
    %c0_i32_0 = arith.constant 0 : i32
    %c0_i32_1 = arith.constant 0 : i32
    return %c0_i32, %c0_i32_0 : i32, i32
  }
  func.func @transform_2(%arg0: i32) -> (i32, i32) {
    %c0_i32 = arith.constant 0 : i32
    %c0_i32_0 = arith.constant 0 : i32
    %c0_i32_1 = arith.constant 0 : i32
    return %c0_i32, %c0_i32_0 : i32, i32
  }
  func.func @transform_3(%arg0: i32) -> (i32, i32) {
    %c0_i32 = arith.constant 0 : i32
    %c0_i32_0 = arith.constant 0 : i32
    %c0_i32_1 = arith.constant 0 : i32
    return %c0_i32, %c0_i32_0 : i32, i32
  }
  func.func @transform_4(%arg0: i32) -> (i32, i32) {
    %c0_i32 = arith.constant 0 : i32
    %c0_i32_0 = arith.constant 0 : i32
    %c0_i32_1 = arith.constant 0 : i32
    return %c0_i32, %c0_i32_0 : i32, i32
  }
  func.func @transform_5(%arg0: i32) -> (i32, i32) {
    %c0_i32 = arith.constant 0 : i32
    %c0_i32_0 = arith.constant 0 : i32
    %c0_i32_1 = arith.constant 0 : i32
    return %c0_i32, %c0_i32_0 : i32, i32
  }
  func.func @transform_6(%arg0: i32) -> (i32, i32) {
    %c0_i32 = arith.constant 0 : i32
    %c0_i32_0 = arith.constant 0 : i32
    %c0_i32_1 = arith.constant 0 : i32
    return %c0_i32, %c0_i32_0 : i32, i32
  }
  func.func @transform_7(%arg0: i32) -> (i32, i32) {
    %c0_i32 = arith.constant 0 : i32
    %c0_i32_0 = arith.constant 0 : i32
    return %arg0, %c0_i32 : i32, i32
  }
}

</mosaic_0001>

<llo_original>
// kernel: _forward.1
$region0: #{_forward.1}
  #allocation0 [shape = 'u32[]', space=smem, size = 0x4, offset = 0x4, fixed_abs, tag = 'smem constant byte address 0x4 - core index']
  #allocation1 [shape = 'u32[72,128]{1,0:T(1,128)}', space=vmem, size = 0x9000, scoped, tag = 'internal scratch']
  %s0 = inlined_call_operand.vmem [shape: bf16[8,64], index: 0, kind: input, shape index: {}]
  %s1 = inlined_call_operand.vmem [shape: bf16[64,128], index: 1, kind: input, shape index: {}]
  %s2 = inlined_call_operand.vmem [shape: f32[1,128], index: 2, kind: input, shape index: {}]
  %s3 = inlined_call_operand.vmem [shape: bf16[128,64], index: 3, kind: input, shape index: {}]
  %s4 = inlined_call_operand.vmem [shape: f32[1,64], index: 4, kind: input, shape index: {}]
  %s5 = inlined_call_operand.vmem [shape: bf16[64,8], index: 5, kind: input, shape index: {}]
  %s6 = inlined_call_operand.vmem [shape: f32[1,8], index: 6, kind: input, shape index: {}]
  %s7 = inlined_call_operand.vmem [shape: f32[8,8], index: 7, kind: output, shape index: {}]
  %s8 = sld [smem:[#allocation0]]
  $region38: #{_forward.1} parent=0
    _
  %s10 = ssub.s32 1, %s8
  %s11 = scalar_select 0, %s10, %s8
  // Predicated region
  $region2: #{_forward.1} parent=0 // pred_check
    _
  $region3: #{_forward.1} parent=0 // pred_check_branch
    %13 = sbr.rel (0) target = $region5
  $region4: #{_forward.1} parent=0 // pred_region
    _
  $region5: #{_forward.1} parent=0 // pred_fallthru
    _
  // Predicated region
  $region6: #{_forward.1} parent=0 // pred_check
    _
  $region7: #{_forward.1} parent=0 // pred_check_branch
    %15 = sbr.rel (0) target = $region9
  $region8: #{_forward.1} parent=0 // pred_region
    _
  $region9: #{_forward.1} parent=0 // pred_fallthru
    _
  // Predicated region
  $region10: #{_forward.1} parent=0 // pred_check
    _
  $region11: #{_forward.1} parent=0 // pred_check_branch
    %17 = sbr.rel (0) target = $region13
  $region12: #{_forward.1} parent=0 // pred_region
    _
  $region13: #{_forward.1} parent=0 // pred_fallthru
    _
  // Predicated region
  $region14: #{_forward.1} parent=0 // pred_check
    _
  $region15: #{_forward.1} parent=0 // pred_check_branch
    %19 = sbr.rel (0) target = $region17
  $region16: #{_forward.1} parent=0 // pred_region
    _
  $region17: #{_forward.1} parent=0 // pred_fallthru
    _
  // Predicated region
  $region18: #{_forward.1} parent=0 // pred_check
    _
  $region19: #{_forward.1} parent=0 // pred_check_branch
    %21 = sbr.rel (0) target = $region21
  $region20: #{_forward.1} parent=0 // pred_region
    _
  $region21: #{_forward.1} parent=0 // pred_fallthru
    _
  // Predicated region
  $region22: #{_forward.1} parent=0 // pred_check
    _
  $region23: #{_forward.1} parent=0 // pred_check_branch
    %23 = sbr.rel (0) target = $region25
  $region24: #{_forward.1} parent=0 // pred_region
    _
  $region25: #{_forward.1} parent=0 // pred_fallthru
    _
  // Predicated region
  $region26: #{_forward.1} parent=0 // pred_check
    _
  $region27: #{_forward.1} parent=0 // pred_check_branch
    %25 = sbr.rel (0) target = $region29
  $region28: #{_forward.1} parent=0 // pred_region
    _
  $region29: #{_forward.1} parent=0 // pred_fallthru
    _
  %v27 = vld [vmem:[%s0] sm:$0xf]
  %v28 = vld [vmem:[%s1] sm:$0xf]
  %v29 = vld [vmem:[%s1 + $0x4] sm:$0xf]
  %v30 = vld [vmem:[%s1 + $0x8] sm:$0xf]
  %v31 = vld [vmem:[%s1 + $0xc] sm:$0xf]
  %v32 = vld [vmem:[%s1 + $0x10] sm:$0xf]
  %v33 = vld [vmem:[%s1 + $0x14] sm:$0xf]
  %v34 = vld [vmem:[%s1 + $0x18] sm:$0xf]
  %v35 = vld [vmem:[%s1 + $0x1c] sm:$0xf]
  %v36 = vld [vmem:[%s2] sm:$0x1]
  %v38 = vperm.slane %v36, 0
  %v48 = vunpack.c.l.b16 %v28
  %v49 = vunpack.c.l.b16 %v29
  %v50 = vunpack.c.l.b16 %v30
  %v51 = vunpack.c.l.b16 %v31
  %v52 = vunpack.c.l.b16 %v32
  %v53 = vunpack.c.l.b16 %v33
  %v54 = vunpack.c.l.b16 %v34
  %v55 = vunpack.c.l.b16 %v35
  %v56 = vpack.c.b16 %v49, %v48
  %v57 = vpack.c.b16 %v51, %v50
  %v58 = vpack.c.b16 %v53, %v52
  %v59 = vpack.c.b16 %v55, %v54
  %vm64 = vcmask 523264
  %v66 = vsel %vm64, %v27, 0
  %68 = vmatpush.bf16.msra.mxu0 0
  %69 = vmatpush.bf16.msra.mxu0 0
  %70 = vmatpush.bf16.msra.mxu0 0
  %71 = vmatpush.bf16.msra.mxu0 0
  %72 = vmatpush.bf16.msra.mxu0 %v59
  %73 = vmatpush.bf16.msra.mxu0 %v58
  %74 = vmatpush.bf16.msra.mxu0 %v57
  %75 = vmatpush.bf16.msra.mxu0 %v56
  %76 = vmatmul.bf16.gmra.mxu0 %v66
  %v77 = vpop.f32.mrf.mxu0
  %v78 = vadd.f32 %v38, %v77
  %v79 = vpop.f32.mrf.mxu0
  %80 = vdwg.mxu0
  %v81 = vtanh.pop %v78
  %v82 = vpack.c.bf16 %v81, %v81
  %v83 = vld [vmem:[%s3] sm:$0xf]
  %v84 = vld [vmem:[%s3 + $0x4] sm:$0xf]
  %v85 = vld [vmem:[%s3 + $0x8] sm:$0xf]
  %v86 = vld [vmem:[%s3 + $0xc] sm:$0xf]
  %v87 = vld [vmem:[%s3 + $0x10] sm:$0xf]
  %v88 = vld [vmem:[%s3 + $0x14] sm:$0xf]
  %v89 = vld [vmem:[%s3 + $0x18] sm:$0xf]
  %v90 = vld [vmem:[%s3 + $0x1c] sm:$0xf]
  %v91 = vld [vmem:[%s3 + $0x20] sm:$0xf]
  %v92 = vld [vmem:[%s3 + $0x24] sm:$0xf]
  %v93 = vld [vmem:[%s3 + $0x28] sm:$0xf]
  %v94 = vld [vmem:[%s3 + $0x2c] sm:$0xf]
  %v95 = vld [vmem:[%s3 + $0x30] sm:$0xf]
  %v96 = vld [vmem:[%s3 + $0x34] sm:$0xf]
  %v97 = vld [vmem:[%s3 + $0x38] sm:$0xf]
  %v98 = vld [vmem:[%s3 + $0x3c] sm:$0xf]
  %v99 = vld [vmem:[%s4] sm:$0x1]
  %v101 = vperm.slane %v99, 0
  %v119 = vunpack.c.l.b16 %v83
  %v120 = vunpack.c.l.b16 %v84
  %v121 = vunpack.c.l.b16 %v85
  %v122 = vunpack.c.l.b16 %v86
  %v123 = vunpack.c.l.b16 %v87
  %v124 = vunpack.c.l.b16 %v88
  %v125 = vunpack.c.l.b16 %v89
  %v126 = vunpack.c.l.b16 %v90
  %v127 = vunpack.c.l.b16 %v91
  %v128 = vunpack.c.l.b16 %v92
  %v129 = vunpack.c.l.b16 %v93
  %v130 = vunpack.c.l.b16 %v94
  %v131 = vunpack.c.l.b16 %v95
  %v132 = vunpack.c.l.b16 %v96
  %v133 = vunpack.c.l.b16 %v97
  %v134 = vunpack.c.l.b16 %v98
  %v135 = vpack.c.b16 %v120, %v119
  %v136 = vpack.c.b16 %v122, %v121
  %v137 = vpack.c.b16 %v124, %v123
  %v138 = vpack.c.b16 %v126, %v125
  %v139 = vpack.c.b16 %v128, %v127
  %v140 = vpack.c.b16 %v130, %v129
  %v141 = vpack.c.b16 %v132, %v131
  %v142 = vpack.c.b16 %v134, %v133
  %151 = vmatpush.bf16.msra.mxu0 %v142
  %152 = vmatpush.bf16.msra.mxu0 %v141
  %153 = vmatpush.bf16.msra.mxu0 %v140
  %154 = vmatpush.bf16.msra.mxu0 %v139
  %155 = vmatpush.bf16.msra.mxu0 %v138
  %156 = vmatpush.bf16.msra.mxu0 %v137
  %157 = vmatpush.bf16.msra.mxu0 %v136
  %158 = vmatpush.bf16.msra.mxu0 %v135
  %159 = vmatmul.bf16.gmra.mxu0 %v82
  %v160 = vpop.f32.mrf.mxu0
  %v161 = vadd.f32 %v101, %v160
  %v162 = vpop.f32.mrf.mxu0
  %163 = vdwg.mxu0
  %v164 = vtanh.pop %v161
  %v165 = vpack.c.bf16 %v164, %v164
  %v166 = vld [vmem:[%s5] sm:$0xf]
  %v167 = vld [vmem:[%s5 + $0x4] sm:$0xf]
  %v168 = vld [vmem:[%s5 + $0x8] sm:$0xf]
  %v169 = vld [vmem:[%s5 + $0xc] sm:$0xf]
  %v170 = vld [vmem:[%s5 + $0x10] sm:$0xf]
  %v171 = vld [vmem:[%s5 + $0x14] sm:$0xf]
  %v172 = vld [vmem:[%s5 + $0x18] sm:$0xf]
  %v173 = vld [vmem:[%s5 + $0x1c] sm:$0xf]
  %v174 = vld [vmem:[%s6] sm:$0x1]
  %v176 = vperm.slane %v174, 0
  %v186 = vunpack.c.l.b16 %v166
  %v187 = vunpack.c.l.b16 %v167
  %v188 = vunpack.c.l.b16 %v168
  %v189 = vunpack.c.l.b16 %v169
  %v190 = vunpack.c.l.b16 %v170
  %v191 = vunpack.c.l.b16 %v171
  %v192 = vunpack.c.l.b16 %v172
  %v193 = vunpack.c.l.b16 %v173
  %v194 = vpack.c.b16 %v187, %v186
  %v195 = vpack.c.b16 %v189, %v188
  %v196 = vpack.c.b16 %v191, %v190
  %v197 = vpack.c.b16 %v193, %v192
  %v203 = vsel %vm64, %v165, 0
  %205 = vmatpush.bf16.msra.mxu0 0
  %206 = vmatpush.bf16.msra.mxu0 0
  %207 = vmatpush.bf16.msra.mxu0 0
  %208 = vmatpush.bf16.msra.mxu0 0
  %209 = vmatpush.bf16.msra.mxu0 %v197
  %210 = vmatpush.bf16.msra.mxu0 %v196
  %211 = vmatpush.bf16.msra.mxu0 %v195
  %212 = vmatpush.bf16.msra.mxu0 %v194
  %213 = vmatmul.bf16.gmra.mxu0 %v203
  %v214 = vpop.f32.mrf.mxu0
  %v215 = vadd.f32 %v176, %v214
  %v216 = vpop.f32.mrf.mxu0
  %217 = vdwg.mxu0
  %vm218 = vcmask 64512
  %219 = vst.msk [vmem:[%s7] sm:$0xff] %vm218, %v215
  // Predicated region
  $region30: #{_forward.1} parent=0 // pred_check
    _
  $region31: #{_forward.1} parent=0 // pred_check_branch
    %221 = sbr.rel (0) target = $region33
  $region32: #{_forward.1} parent=0 // pred_region
    _
  $region33: #{_forward.1} parent=0 // pred_fallthru
    _
  // Predicated region
  $region34: #{_forward.1} parent=0 // pred_check
    _
  $region35: #{_forward.1} parent=0 // pred_check_branch
    %223 = sbr.rel (0) target = $region37
  $region36: #{_forward.1} parent=0 // pred_region
    _
  $region37: #{_forward.1} parent=0 // pred_fallthru
    _

</llo_original>
